<compile_context>
chip_gen: v7x
topology: tpu7x:2x2x1
jax: 0.10.0
libtpu: 0.0.40
codegen_flags: <defaults>
</compile_context>

<pallas_src>
import jax
import jax.numpy as jnp
from jax.experimental import pallas as pl
from jax.experimental.pallas import tpu as pltpu

_F32 = jnp.float32


def _learnedweight_kernel(packed_ref, out_ref):
    # packed layout (lanes 0..3): [fsl_w, da_w, fsl_loss, da_loss]
    p = packed_ref[...]                       # (1, 4) f32, single vld
    w = p[:, 0:2]                             # (1, 2) weights
    l = p[:, 2:4]                             # (1, 2) losses
    # one EUP exp over both weights + one VPU fma, all in a single vreg
    contrib = w + jnp.exp(-w) * l             # (1, 2)
    # two-lane add on the VPU slot instead of an XLU cross-lane reduce
    out_ref[...] = contrib[:, 0:1] + contrib[:, 1:2]   # (1, 1)


def _pallas_forward(packed):
    vmem = pl.BlockSpec(memory_space=pltpu.MemorySpace.VMEM)
    return pl.pallas_call(
        _learnedweight_kernel,
        out_shape=jax.ShapeDtypeStruct((1, 1), _F32),
        in_specs=[vmem],
        out_specs=vmem,
        compiler_params=pltpu.CompilerParams(allow_input_fusion=[True]),
        cost_estimate=pl.CostEstimate(flops=6, transcendentals=2,
                                      bytes_accessed=20),
    )(packed)


def _forward_impl(fsl_weight, da_weight, fsl_loss, da_loss):
    packed = jnp.concatenate(
        [
            jnp.asarray(fsl_weight, _F32).reshape(1, 1),
            jnp.asarray(da_weight, _F32).reshape(1, 1),
            jnp.asarray(fsl_loss, _F32).reshape(1, 1),
            jnp.asarray(da_loss, _F32).reshape(1, 1),
        ],
        axis=1,
    )  # (1, 4) — fuses into the pallas_call input via allow_input_fusion
    return _pallas_forward(packed).reshape(1)


@jax.custom_vjp
def learnedweight_forward(fsl_weight, da_weight, fsl_loss, da_loss):
    """fsl_weight/da_weight: (1,) learned params. fsl_loss/da_loss: scalars.

    Returns final_loss with shape (1,), matching the PyTorch module.
    """
    return _forward_impl(fsl_weight, da_weight, fsl_loss, da_loss)


def _learnedweight_fwd(fsl_weight, da_weight, fsl_loss, da_loss):
    y = _forward_impl(fsl_weight, da_weight, fsl_loss, da_loss)
    return y, (fsl_weight, da_weight, fsl_loss, da_loss)


def _learnedweight_bwd(residuals, g):
    fsl_weight, da_weight, fsl_loss, da_loss = residuals
    fw = jnp.asarray(fsl_weight, _F32)
    dw = jnp.asarray(da_weight, _F32)
    fl = jnp.asarray(fsl_loss, _F32)
    dl = jnp.asarray(da_loss, _F32)
    g32 = jnp.asarray(g, _F32)                      # (1,)
    e_f = jnp.exp(-fw)                              # (1,)
    e_d = jnp.exp(-dw)                              # (1,)
    d_fsl_w = (g32 * (1.0 - e_f * fl)).reshape(jnp.shape(fsl_weight))
    d_da_w = (g32 * (1.0 - e_d * dl)).reshape(jnp.shape(da_weight))
    d_fsl_l = jnp.sum(g32 * e_f).reshape(jnp.shape(fsl_loss))
    d_da_l = jnp.sum(g32 * e_d).reshape(jnp.shape(da_loss))
    return d_fsl_w, d_da_w, d_fsl_l, d_da_l


learnedweight_forward.defvjp(_learnedweight_fwd, _learnedweight_bwd)

learnedweight_forward_jit = jax.jit(learnedweight_forward)


if __name__ == "__main__":
    key = jax.random.PRNGKey(0)
    k1, k2 = jax.random.split(key)

    # Parameters: torch.ones(1) for both learned weights (deterministic init).
    fsl_weight = jnp.ones((1,), dtype=jnp.float32)
    da_weight = jnp.ones((1,), dtype=jnp.float32)

    # Synthetic scalar losses (outputs of upstream loss functions).
    fsl_loss = jax.random.uniform(k1, (), dtype=jnp.float32, minval=0.0, maxval=2.0)
    da_loss = jax.random.uniform(k2, (), dtype=jnp.float32, minval=0.0, maxval=2.0)

    # Forward through the Pallas kernel.
    final_loss = learnedweight_forward_jit(fsl_weight, da_weight, fsl_loss, da_loss)
    final_loss = jax.block_until_ready(final_loss)

    # Pure-JAX reference check (forward).
    ref = (fsl_weight + jnp.exp(-fsl_weight) * fsl_loss
           + da_weight + jnp.exp(-da_weight) * da_loss)
    assert final_loss.shape == (1,)
    assert jnp.allclose(final_loss, ref, rtol=1e-6, atol=1e-6), (final_loss, ref)

    # Gradient check through the analytic custom_vjp (the module's purpose).
    def scalar_loss(fw, dw):
        return jnp.sum(learnedweight_forward(fw, dw, fsl_loss, da_loss))

    g_fw, g_dw = jax.jit(jax.grad(scalar_loss, argnums=(0, 1)))(fsl_weight, da_weight)
    g_fw = jax.block_until_ready(g_fw)
    ref_g_fw = 1.0 - jnp.exp(-fsl_weight) * fsl_loss
    ref_g_dw = 1.0 - jnp.exp(-da_weight) * da_loss
    assert jnp.allclose(g_fw, ref_g_fw, rtol=1e-6, atol=1e-6), (g_fw, ref_g_fw)
    assert jnp.allclose(g_dw, ref_g_dw, rtol=1e-6, atol=1e-6), (g_dw, ref_g_dw)

    print("KERNEL_OK")
</pallas_src>

<mosaic_0001>
module attributes {stable_mosaic.version = 11 : i64} {
  func.func @_learnedweight_kernel(%arg0: memref<1x4xf32, #tpu.memory_space<vmem>>, %arg1: memref<1x1xf32, #tpu.memory_space<vmem>>) attributes {dimension_semantics = [], scalar_prefetch = 0 : i64, scratch_operands = 0 : i64, tpu.core_type = #tpu.core_type<tc>} {
    %c0 = arith.constant 0 : index
    %c0_0 = arith.constant 0 : index
    %0 = vector.load %arg0[%c0, %c0_0] : memref<1x4xf32, #tpu.memory_space<vmem>>, vector<1x4xf32>
    %1 = vector.extract_strided_slice %0 {offsets = [0, 0], sizes = [1, 2], strides = [1, 1]} : vector<1x4xf32> to vector<1x2xf32>
    %2 = vector.extract_strided_slice %0 {offsets = [0, 2], sizes = [1, 2], strides = [1, 1]} : vector<1x4xf32> to vector<1x2xf32>
    %cst = arith.constant 0.000000e+00 : f32
    %3 = vector.broadcast %cst : f32 to vector<1x2xf32>
    %4 = arith.subf %3, %1 : vector<1x2xf32>
    %5 = math.exp %4 : vector<1x2xf32>
    %6 = arith.mulf %5, %2 : vector<1x2xf32>
    %7 = arith.addf %1, %6 : vector<1x2xf32>
    %8 = vector.extract_strided_slice %7 {offsets = [0, 0], sizes = [1, 1], strides = [1, 1]} : vector<1x2xf32> to vector<1x1xf32>
    %9 = vector.extract_strided_slice %7 {offsets = [0, 1], sizes = [1, 1], strides = [1, 1]} : vector<1x2xf32> to vector<1x1xf32>
    %10 = arith.addf %8, %9 : vector<1x1xf32>
    %c0_1 = arith.constant 0 : index
    %c0_2 = arith.constant 0 : index
    %11 = vector.load %arg1[%c0_1, %c0_2] : memref<1x1xf32, #tpu.memory_space<vmem>>, vector<1x1xf32>
    tpu.vector_store %arg1[%c0_1, %c0_2], %10 {strides = array<i32>} : memref<1x1xf32, #tpu.memory_space<vmem>>, vector<1x1xf32>,
    return
  }
}

</mosaic_0001>

<llo_original>
// kernel: learnedweight_forward.2
$region0: #{learnedweight_forward.2}
  #allocation0 [shape = 'u32[]', space=smem, size = 0x4, offset = 0x4, fixed_abs, tag = 'smem constant byte address 0x4 - core index']
  #allocation1 [shape = 'u32[144,128]{1,0:T(1,128)}', space=vmem, size = 0x12000, scoped, tag = 'internal scratch']
  #allocation2 [shape = 'u32[2048]{0}', space=vmem, size = 0x2000, scoped, tag = 'scoped memory for learnedweight_forward.2']
  #allocation3 [shape = 'u32[2048]{0}', space=vmem, size = 0x2000, scoped, tag = 'scoped memory for learnedweight_forward.2']
  #allocation4 [shape = 'u32[2048]{0}', space=vmem, size = 0x2000, scoped, tag = 'scoped memory for learnedweight_forward.2']
  #allocation5 [shape = 'u32[2048]{0}', space=vmem, size = 0x2000, scoped, tag = 'scoped memory for learnedweight_forward.2']
  #allocation6 [shape = 'u32[2048]{0}', space=vmem, size = 0x2000, scoped, tag = 'scoped memory for learnedweight_forward.2']
  #allocation7 [shape = 'u32[2048]{0}', space=vmem, size = 0x2000, scoped, tag = 'scoped memory for learnedweight_forward.2']
  #allocation8 [shape = 'u32[2048]{0}', space=vmem, size = 0x2000, scoped, tag = 'scoped memory for learnedweight_forward.2']
  #allocation9 [shape = 'u32[2048]{0}', space=vmem, size = 0x2000, scoped, tag = 'scoped memory for learnedweight_forward.2']
  #allocation10 [shape = 'u32[2048]{0}', space=vmem, size = 0x2000, scoped, tag = 'scoped memory for learnedweight_forward.2']
  #allocation11 [shape = 'u32[2048]{0}', space=vmem, size = 0x2000, scoped, tag = 'scoped memory for learnedweight_forward.2']
  #allocation12 [shape = 'u32[2048]{0}', space=vmem, size = 0x2000, scoped, tag = 'scoped memory for learnedweight_forward.2']
  #allocation13 [shape = 'u32[2048]{0}', space=vmem, size = 0x2000, scoped, tag = 'scoped memory for learnedweight_forward.2']
  #allocation14 [shape = 'u32[2048]{0}', space=vmem, size = 0x2000, scoped, tag = 'scoped memory for learnedweight_forward.2']
  #allocation15 [shape = 'u32[2048]{0}', space=vmem, size = 0x2000, scoped, tag = 'scoped memory for learnedweight_forward.2']
  #allocation16 [shape = 'u32[2048]{0}', space=vmem, size = 0x2000, scoped, tag = 'scoped memory for learnedweight_forward.2']
  #allocation17 [shape = 'u32[2048]{0}', space=vmem, size = 0x2000, scoped, tag = 'scoped memory for learnedweight_forward.2']
  #allocation18 [shape = 'u32[2048]{0}', space=vmem, size = 0x2000, scoped, tag = 'scoped memory for learnedweight_forward.2']
  #allocation19 [shape = 'u32[2048]{0}', space=vmem, size = 0x2000, scoped, tag = 'scoped memory for learnedweight_forward.2']
  #allocation20 [shape = 'u32[2048]{0}', space=vmem, size = 0x2000, scoped, tag = 'scoped memory for learnedweight_forward.2']
  #allocation21 [shape = 'u32[2048]{0}', space=vmem, size = 0x2000, scoped, tag = 'scoped memory for learnedweight_forward.2']
  %s0 = inlined_call_operand.<no memory space> [shape: f32[1,1], index: 0, kind: input, shape index: {}]
  %s1 = inlined_call_operand.<no memory space> [shape: f32[], index: 1, kind: input, shape index: {}]
  %s2 = inlined_call_operand.<no memory space> [shape: f32[1,1], index: 2, kind: input, shape index: {}]
  %s3 = inlined_call_operand.<no memory space> [shape: f32[1,1], index: 3, kind: input, shape index: {}]
  %s4 = inlined_call_operand.<no memory space> [shape: f32[1,1], index: 4, kind: input, shape index: {}]
  %s5 = inlined_call_operand.hbm [shape: f32[1,1], index: 5, kind: output, shape index: {}]
  %s6 = sld [smem:[#allocation0]]
  $region10: #{learnedweight_forward.2} parent=0
    _
  %s8 = ssub.s32 1, %s6
  %s9 = scalar_select 0, %s8, %s6
  %v10 = vstv %s0
  %v11 = vstv %s1
  %v12 = vstv %s2
  %v13 = vstv %s1
  %v14 = vstv %s3
  %v15 = vstv %s1
  %v16 = vstv %s4
  %v17 = vstv %s1
  $region1: #{learnedweight_forward.2} parent=0
    #allocation22 [shape = 'u8[512]{0}', space=vmem, size = 0x400, scoped, tag = 'output window, operand 0, single buffered']
    #allocation23 [shape = 's32[1]{0}', space=sflag, size = 0x4, scoped, tag = 'scoped memory for learnedweight_forward.2']
    #allocation24 [shape = 'u8[512]{0}', space=vmem, size = 0x400, dematerialized = true, scoped, tag = 'FusionAdapter Buffer %fusion.1 = f32[1,4]{1,0:T(1,128)} fusion(%param_0.5, %param_1.6, %param_2.4, %param_3.6, %param_4.4), kind=kLoop, calls=%fused_computation.1.clone, metadata={op_name="jit(learnedweight_forward)/concatenate" stack_frame_id=6}']
    %18 = vsyncpa [#allocation23], 0
    %s20 = ssub.s32 1, 0
    %s21 = smul.u32 16, %s20
    %s23 = ssub.s32 1, 0
    %s24 = smul.u32 16, %s23
    %s26 = ssub.s32 1, 0
    %s27 = smul.u32 16, %s26
    %v28 = vlaneseq
    %v29 = vshrl.u32 %v28, 7
    %vm31 = vcmp.lt.s32.totalorder %v29, 1
    %v32 = vsel %vm31, %v10, %v11
    %v33 = vlaneseq
    %v34 = vand.u32 %v33, 127
    %v35 = vadd.s32 %v34, 128
    %vm36 = vcmp.lt.s32.totalorder %v35, 129
    %v37 = vsel %vm36, %v32, %v11
    %v38 = vlaneseq
    %v39 = vand.u32 %v38, 127
    %vm40 = vcmp.lt.s32.totalorder %v39, 125
    %v41 = vsel %vm40, %v37, %v11
    %42 = vrot.lane.b32.xlu0 %v41, 3
    %v43 = vpop.permute.xlu0 %42
    %v44 = vlaneseq
    %v45 = vshrl.u32 %v44, 7
    %vm47 = vcmp.lt.s32.totalorder %v45, 1
    %v48 = vsel %vm47, %v12, %v13
    %v49 = vlaneseq
    %v50 = vand.u32 %v49, 127
    %v51 = vadd.s32 %v50, 128
    %vm52 = vcmp.lt.s32.totalorder %v51, 129
    %v53 = vsel %vm52, %v48, %v13
    %v54 = vlaneseq
    %v55 = vand.u32 %v54, 127
    %vm56 = vcmp.lt.s32.totalorder %v55, 126
    %v57 = vsel %vm56, %v53, %v13
    %58 = vrot.lane.b32.xlu0 %v57, 2
    %v59 = vpop.permute.xlu0 %58
    %v60 = vlaneseq
    %v61 = vshrl.u32 %v60, 7
    %vm63 = vcmp.lt.s32.totalorder %v61, 1
    %v64 = vsel %vm63, %v14, %v15
    %v65 = vlaneseq
    %v66 = vand.u32 %v65, 127
    %v67 = vadd.s32 %v66, 128
    %vm68 = vcmp.lt.s32.totalorder %v67, 129
    %v69 = vsel %vm68, %v64, %v15
    %v70 = vlaneseq
    %v71 = vand.u32 %v70, 127
    %vm72 = vcmp.lt.s32.totalorder %v71, 127
    %v73 = vsel %vm72, %v69, %v15
    %74 = vrot.lane.b32.xlu0 %v73, 1
    %v75 = vpop.permute.xlu0 %74
    %v76 = vlaneseq
    %v77 = vshrl.u32 %v76, 7
    %vm79 = vcmp.lt.s32.totalorder %v77, 1
    %v80 = vsel %vm79, %v16, %v17
    %v81 = vlaneseq
    %v82 = vand.u32 %v81, 127
    %vm84 = vcmp.lt.s32.totalorder %v82, 1
    %v85 = vsel %vm84, %v80, %v17
    %86 = xla_tuple %v85, %v75
    %87 = xla_tuple %86
    %v88 = vmax.f32 %v85, %v75
    %89 = xla_tuple %v88
    %90 = xla_tuple %v88, %v59
    %91 = xla_tuple %90
    %v92 = vmax.f32 %v88, %v59
    %93 = xla_tuple %v92
    %94 = xla_tuple %v92, %v43
    %95 = xla_tuple %94
    %v96 = vmax.f32 %v92, %v43
    %97 = xla_tuple %v96
    %99 = vst [vmem:[#allocation24] sm:$0x1] %v96
    %v100 = vld [vmem:[#allocation24] sm:$0x1]
    %v101 = vsub.f32 0.0, %v100
    %v102 = vmul.f32 %v101, 1.442695
    %v103 = vpow.pop %v102
    %105 = vrot.lane.b32.xlu0 %v100, 126
    %v106 = vpop.permute.xlu0 %105
    %v108 = vmul.f32 %v103, %v106
    %v109 = vadd.f32 %v100, %v108
    %111 = vrot.lane.b32.xlu0 %v109, 127
    %v112 = vpop.permute.xlu0 %111
    %v114 = vadd.f32 %v109, %v112
    %vm115 = vcmask 0
    %116 = vst.msk [vmem:[#allocation22] sm:$0x1] %vm115, %v114
    // Predicated region
    $region2: #{learnedweight_forward.2} parent=1 // pred_check
      _
    $region3: #{learnedweight_forward.2} parent=1 // pred_check_branch
      %118 = sbr.rel (0) target = $region5
    $region4: #{learnedweight_forward.2} parent=1 // pred_region
      %s120 = ssub.s32 16, 16
      %121 = vsyncadd [#allocation23], %s120
      %s123 = sshll.u32 [#allocation22], 4
      %s124 = int_to_ptr.vmem [resolvable:$true] %s123
      %126 = dma.vmem_to_hbm [thread:$0]  %s124, 16, %s5, [#allocation23]
    $region5: #{learnedweight_forward.2} parent=1 // pred_fallthru
      _
    // Predicated region
    $region6: #{learnedweight_forward.2} parent=1 // pred_check
      _
    $region7: #{learnedweight_forward.2} parent=1 // pred_check_branch
      %128 = sbr.rel (0) target = $region9
    $region8: #{learnedweight_forward.2} parent=1 // pred_region
      %129 = dma.done [#allocation23], 16
    $region9: #{learnedweight_forward.2} parent=1 // pred_fallthru
      _
    %130 = vsyncpa [#allocation23], 1

</llo_original>
